<compile_context>
chip_gen: v5e
topology: v5e:2x2
jax: 0.10.0
libtpu: 0.0.40
codegen_flags: <defaults>
</compile_context>

<pallas_src>
import jax
import jax.numpy as jnp
from jax.experimental import pallas as pl
from jax.experimental.pallas import tpu as pltpu


# ----------------------------------------------------------------------------
# kernels
# ----------------------------------------------------------------------------

def _time_decay_kernel_flat(t_ref, w_ref, x_ref, o_ref):
    # t_ref: (TB, S) f32, w_ref: (S, S*D) f32 column-repeated decay weight,
    # x_ref / o_ref: (TB, S*D) in the activation dtype.
    tw = jnp.dot(t_ref[...], w_ref[...],
                 preferred_element_type=jnp.float32)           # (TB, S*D) MXU
    o_ref[...] = (x_ref[...].astype(jnp.float32) * tw).astype(o_ref.dtype)


def _time_decay_kernel_3d(t_ref, w_ref, x_ref, o_ref):
    # t_ref: (TB, S) f32 (singleton squeezed), w_ref: (S, S) f32,
    # x_ref / o_ref: (TB, S, D) in the activation dtype.  Used when D is
    # already a multiple of 128 (stores are lane-dense without expansion).
    tw = jnp.dot(t_ref[...], w_ref[...],
                 preferred_element_type=jnp.float32)           # (TB, S)
    o_ref[...] = (x_ref[...].astype(jnp.float32)
                  * tw[:, :, None]).astype(o_ref.dtype)


# ----------------------------------------------------------------------------
# sizing helpers
# ----------------------------------------------------------------------------

def _pad_to(x, m):
    return -(-x // m) * m


def _sublane(dtype):
    # sublane packing granularity: 8 rows for 32-bit, 16 for 16-bit, 32 for 8-bit
    return 8 * max(1, 4 // jnp.dtype(dtype).itemsize)


def _vmem_capacity_bytes():
    try:
        v = int(pltpu.get_tpu_info().vmem_capacity_bytes)
        if v > 0:
            return v
    except Exception:
        pass
    return 64 << 20   # conservative fallback (v7x physical VMEM)


def _num_tensorcores():
    try:
        info = pltpu.get_tpu_info()
        for attr in ("num_cores", "core_count", "cores_per_chip",
                     "tensorcore_count"):
            v = getattr(info, attr, None)
            if isinstance(v, int) and v > 0:
                return v
    except Exception:
        pass
    return 1


def _choose_block_batch(b, s, d, x_dtype, want_flat, num_cores):
    """Pick the per-step batch tile, padding and VMEM limit."""
    itemsize = jnp.dtype(x_dtype).itemsize
    cap = _vmem_capacity_bytes()
    budget = max(16 << 20, cap // 2)      # ~32 MiB on v7x, ~64 MiB on v5e/v6e

    def sizes(flat):
        if flat:
            cols = _pad_to(s * d, 128)
            per_b = 2 * 2 * cols * itemsize            # x + out tiles, 2x buffered
            per_b += 2 * _pad_to(s, 128) * 4           # f32 time-interval row
            w = 2 * _pad_to(s, 8) * cols * 4           # column-repeated weight
        else:
            tile = _pad_to(s, _sublane(x_dtype)) * _pad_to(d, 128)
            per_b = 2 * 2 * tile * itemsize
            per_b += 2 * 8 * _pad_to(s, 128) * 4
            w = 2 * _pad_to(s, 8) * _pad_to(s, 128) * 4
        return per_b, w

    flat = want_flat
    per_b, w_bytes = sizes(flat)
    avail = budget - w_bytes
    # flat blocks need TB % 8 == 0 unless TB spans the whole batch; if there is
    # not even room for 8 rows, fall back to the (B, S, D) layout.
    if flat and (avail // max(per_b, 1)) < min(8, b):
        flat = False
        per_b, w_bytes = sizes(flat)
        avail = budget - w_bytes

    if avail < per_b:
        # TODO(synk): S-tiling path for very large number_of_snapshot.
        raise ValueError(
            f"TimeDecay: one batch element (S={s}, D={d}) plus the decay "
            f"weight does not fit the VMEM budget ({budget >> 20} MiB).")

    tb = max(1, min(b, avail // per_b))

    # keep the single grid axis long enough to feed every TensorCore, but do
    # not force extra steps on single-TC chips (v5e/v6e).
    if num_cores > 1:
        target_steps = 2 * num_cores
        if b >= 8 * target_steps:
            tb = min(tb, max(8, (b // target_steps) // 8 * 8))

    if tb >= b:
        tb, pad_b = b, 0
    else:
        if flat:
            tb = max(8, (tb // 8) * 8)                 # block sublane rule
        pad_b = (-b) % tb                              # pad instead of TB -> 1

    needed = w_bytes + tb * per_b
    vmem_limit = int(min(cap * 0.9, max(32 << 20, needed + (4 << 20))))
    return flat, tb, pad_b, vmem_limit


# ----------------------------------------------------------------------------
# wrapper
# ----------------------------------------------------------------------------

def time_decay(batch_cascade, batch_time_interval, weight_decay):
    """batch_cascade: (..., D) with prod(leading dims) == B*S,
       batch_time_interval: (B, S), weight_decay: (S, S).
       Returns an array with the same shape and dtype as batch_cascade."""
    orig_shape = batch_cascade.shape
    orig_dtype = batch_cascade.dtype
    b, s = batch_time_interval.shape
    d = orig_shape[-1]

    t32 = batch_time_interval.astype(jnp.float32)
    w32 = weight_decay.astype(jnp.float32)

    num_cores = _num_tensorcores()
    want_flat = (d % 128 != 0) and (s * s * d * 4 <= (4 << 20))
    flat, tb, pad_b, vmem_limit = _choose_block_batch(
        b, s, d, orig_dtype, want_flat, num_cores)
    bp = b + pad_b

    itembytes = jnp.dtype(orig_dtype).itemsize
    cost = pl.CostEstimate(
        flops=(2 * b * s * s * (d if flat else 1)) + b * s * d,
        transcendentals=0,
        bytes_accessed=2 * b * s * d * itembytes + b * s * 4 + s * s * 4)

    compiler_params = pltpu.CompilerParams(
        dimension_semantics=("parallel",),
        vmem_limit_bytes=vmem_limit)

    if flat:
        # lane-dense path: (B, S*D) activations, column-repeated weight.
        x = batch_cascade.reshape(b, s * d)
        t = t32
        if pad_b:
            x = jnp.pad(x, ((0, pad_b), (0, 0)))
            t = jnp.pad(t, ((0, pad_b), (0, 0)))
        w_exp = jnp.repeat(w32, d, axis=1)                      # (S, S*D)
        out = pl.pallas_call(
            _time_decay_kernel_flat,
            out_shape=jax.ShapeDtypeStruct((bp, s * d), orig_dtype),
            grid_spec=pltpu.PrefetchScalarGridSpec(
                num_scalar_prefetch=0,
                grid=(bp // tb,),
                in_specs=[
                    pl.BlockSpec((tb, s), lambda bi: (bi, 0)),
                    pl.BlockSpec((s, s * d), lambda bi: (0, 0)),
                    pl.BlockSpec((tb, s * d), lambda bi: (bi, 0)),
                ],
                out_specs=pl.BlockSpec((tb, s * d), lambda bi: (bi, 0)),
            ),
            compiler_params=compiler_params,
            cost_estimate=cost,
        )(t, w_exp, x)
        out = out[:b]
    else:
        # D is already a multiple of 128: broadcast path is lane-dense as-is.
        x = batch_cascade.reshape(b, s, d)
        t = t32.reshape(b, 1, s)
        if pad_b:
            x = jnp.pad(x, ((0, pad_b), (0, 0), (0, 0)))
            t = jnp.pad(t, ((0, pad_b), (0, 0), (0, 0)))
        out = pl.pallas_call(
            _time_decay_kernel_3d,
            out_shape=jax.ShapeDtypeStruct((bp, s, d), orig_dtype),
            grid_spec=pltpu.PrefetchScalarGridSpec(
                num_scalar_prefetch=0,
                grid=(bp // tb,),
                in_specs=[
                    pl.BlockSpec((tb, pl.Squeezed(), s), lambda bi: (bi, 0, 0)),
                    pl.BlockSpec((s, s), lambda bi: (0, 0)),
                    pl.BlockSpec((tb, s, d), lambda bi: (bi, 0, 0)),
                ],
                out_specs=pl.BlockSpec((tb, s, d), lambda bi: (bi, 0, 0)),
            ),
            compiler_params=compiler_params,
            cost_estimate=cost,
        )(t, w32, x)
        out = out[:b]

    return out.reshape(orig_shape)


def time_decay_ref(batch_cascade, batch_time_interval, weight_decay):
    """Pure-JAX reference mirroring the PyTorch forward."""
    tw = jnp.matmul(batch_time_interval, weight_decay)          # (B, S)
    orig_shape = batch_cascade.shape
    d = orig_shape[-1]
    flat = batch_cascade.reshape(-1, d) * tw.reshape(-1, 1)
    return flat.reshape(orig_shape)


if __name__ == "__main__":
    batch, snapshots, hidden = 2, 8, 32   # B, number_of_snapshot, feature dim

    key = jax.random.PRNGKey(0)
    kx, kt, kw = jax.random.split(key, 3)

    batch_cascade = jax.random.normal(
        kx, (batch, snapshots, hidden), dtype=jnp.float32)
    batch_time_interval = jax.random.normal(
        kt, (batch, snapshots), dtype=jnp.float32)
    weight_decay = jax.random.normal(
        kw, (snapshots, snapshots), dtype=jnp.float32)   # ~ nn.Parameter(randn)

    # f32 path
    out = jax.block_until_ready(
        time_decay(batch_cascade, batch_time_interval, weight_decay))
    ref = time_decay_ref(batch_cascade, batch_time_interval, weight_decay)
    assert out.shape == batch_cascade.shape and out.dtype == batch_cascade.dtype
    assert jnp.allclose(out, ref, atol=1e-5, rtol=1e-5), (
        f"f32 max abs err {jnp.max(jnp.abs(out - ref))}")

    # dtype-preserving path: bf16 activations stay bf16 end to end
    x_bf16 = batch_cascade.astype(jnp.bfloat16)
    out_bf16 = jax.block_until_ready(
        time_decay(x_bf16, batch_time_interval, weight_decay))
    ref_bf16 = time_decay_ref(
        x_bf16.astype(jnp.float32), batch_time_interval, weight_decay)
    assert out_bf16.shape == x_bf16.shape and out_bf16.dtype == jnp.bfloat16
    assert jnp.allclose(out_bf16.astype(jnp.float32), ref_bf16,
                        atol=5e-2, rtol=5e-2), (
        f"bf16 max abs err "
        f"{jnp.max(jnp.abs(out_bf16.astype(jnp.float32) - ref_bf16))}")

    print("KERNEL_OK")
</pallas_src>

<mosaic_0001>
module attributes {stable_mosaic.version = 11 : i64} {
  func.func @_time_decay_kernel_flat(%arg0: i32, %arg1: memref<2x8xf32, #tpu.memory_space<vmem>>, %arg2: memref<8x256xf32, #tpu.memory_space<vmem>>, %arg3: memref<2x256xf32, #tpu.memory_space<vmem>>, %arg4: memref<2x256xf32, #tpu.memory_space<vmem>>) attributes {dimension_semantics = [#tpu.dimension_semantics<parallel>], iteration_bounds = array<i64: 1>, scalar_prefetch = 0 : i64, scratch_operands = 0 : i64, tpu.core_type = #tpu.core_type<tc>, window_params = [{transform_indices = @transform_0, window_bounds = array<i64: 2, 8>}, {pipeline_mode = #tpu.pipeline_mode<synchronous>, transform_indices = @transform_1, window_bounds = array<i64: 8, 256>}, {transform_indices = @transform_2, window_bounds = array<i64: 2, 256>}, {transform_indices = @transform_3, window_bounds = array<i64: 2, 256>}]} {
    %c0 = arith.constant 0 : index
    %c0_0 = arith.constant 0 : index
    %0 = vector.load %arg1[%c0, %c0_0] : memref<2x8xf32, #tpu.memory_space<vmem>>, vector<2x8xf32>
    %c0_1 = arith.constant 0 : index
    %c0_2 = arith.constant 0 : index
    %1 = vector.load %arg2[%c0_1, %c0_2] : memref<8x256xf32, #tpu.memory_space<vmem>>, vector<8x256xf32>
    %cst = arith.constant dense<0.000000e+00> : vector<2x256xf32>
    %2 = tpu.matmul %0, %1, %cst {dimension_numbers = #tpu.dot_dimension_numbers<[1], [0], [0], [1], [0, 0, 1, 1], [], []>} : vector<2x8xf32>, vector<8x256xf32>, vector<2x256xf32> -> vector<2x256xf32>
    %c0_3 = arith.constant 0 : index
    %c0_4 = arith.constant 0 : index
    %3 = vector.load %arg3[%c0_3, %c0_4] : memref<2x256xf32, #tpu.memory_space<vmem>>, vector<2x256xf32>
    %4 = arith.mulf %3, %2 : vector<2x256xf32>
    %c0_5 = arith.constant 0 : index
    %c0_6 = arith.constant 0 : index
    %5 = vector.load %arg4[%c0_5, %c0_6] : memref<2x256xf32, #tpu.memory_space<vmem>>, vector<2x256xf32>
    tpu.vector_store %arg4[%c0_5, %c0_6], %4 {strides = array<i32>} : memref<2x256xf32, #tpu.memory_space<vmem>>, vector<2x256xf32>,
    return
  }
  func.func @transform_0(%arg0: i32) -> (i32, i32) {
    %c0_i32 = arith.constant 0 : i32
    %c0_i32_0 = arith.constant 0 : i32
    return %arg0, %c0_i32 : i32, i32
  }
  func.func @transform_1(%arg0: i32) -> (i32, i32) {
    %c0_i32 = arith.constant 0 : i32
    %c0_i32_0 = arith.constant 0 : i32
    %c0_i32_1 = arith.constant 0 : i32
    return %c0_i32, %c0_i32_0 : i32, i32
  }
  func.func @transform_2(%arg0: i32) -> (i32, i32) {
    %c0_i32 = arith.constant 0 : i32
    %c0_i32_0 = arith.constant 0 : i32
    return %arg0, %c0_i32 : i32, i32
  }
  func.func @transform_3(%arg0: i32) -> (i32, i32) {
    %c0_i32 = arith.constant 0 : i32
    %c0_i32_0 = arith.constant 0 : i32
    return %arg0, %c0_i32 : i32, i32
  }
}

</mosaic_0001>

<llo_original>
// kernel: tpu_custom_call.1
$region0: #{tpu_custom_call.1}
  #allocation0 [shape = 'u32[]', space=smem, size = 0x4, offset = 0x4, fixed_abs, tag = 'smem constant byte address 0x4 - core index']
  #allocation1 [shape = 'u32[72,128]{1,0:T(1,128)}', space=vmem, size = 0x9000, scoped, tag = 'internal scratch']
  %s0 = inlined_call_operand.hbm [shape: f32[2,8], index: 0, kind: input, shape index: {}]
  %s1 = inlined_call_operand.hbm [shape: f32[8,256], index: 1, kind: input, shape index: {}]
  %s2 = inlined_call_operand.hbm [shape: f32[2,256], index: 2, kind: input, shape index: {}]
  %s3 = inlined_call_operand.hbm [shape: f32[2,256], index: 3, kind: output, shape index: {}]
  %s4 = sld [smem:[#allocation0]]
  $region34: #{tpu_custom_call.1} parent=0
    _
  %s6 = ssub.s32 1, %s4
  %s7 = scalar_select 0, %s6, %s4
  $region1: #{tpu_custom_call.1} parent=0
    #allocation2 [shape = 'u8[1024]{0}', space=vmem, size = 0x400, scoped, tag = 'input window, operand 0, single buffered']
    #allocation3 [shape = 's32[1]{0}', space=sflag, size = 0x4, scoped, tag = 'scoped memory for tpu_custom_call.1']
    #allocation4 [shape = 's32[1]{0}', space=sflag, size = 0x4, scoped, tag = 'scoped memory for tpu_custom_call.1']
    #allocation5 [shape = 'u8[8192]{0}', space=vmem, size = 0x2000, scoped, tag = 'input window, operand 1, single buffered']
    #allocation6 [shape = 's32[1]{0}', space=sflag, size = 0x4, scoped, tag = 'scoped memory for tpu_custom_call.1']
    #allocation7 [shape = 'u8[2048]{0}', space=vmem, size = 0x800, scoped, tag = 'input window, operand 2, single buffered']
    #allocation8 [shape = 'u8[2048]{0}', space=vmem, size = 0x800, scoped, tag = 'output window, operand 0, single buffered']
    %8 = vsyncpa [#allocation3], 0
    %9 = vsyncpa [#allocation6], 0
    %10 = vsyncpa [#allocation4], 0
    // Predicated region
    $region2: #{tpu_custom_call.1} parent=1 // pred_check
      _
    $region3: #{tpu_custom_call.1} parent=1 // pred_check_branch
      %12 = sbr.rel (0) target = $region5
    $region4: #{tpu_custom_call.1} parent=1 // pred_region
      %14 = vsyncadd [#allocation3], 0
      %s16 = sshll.u32 %s0, 4
      %s17 = int_to_ptr.hbm [resolvable:$true] %s16
      %s18 = sshll.u32 [#allocation2], 4
      %s19 = int_to_ptr.vmem [resolvable:$true] %s18
      %21 = dma.hbm_to_vmem [thread:$0]  %s17, 32, %s19, [#allocation3]
    $region5: #{tpu_custom_call.1} parent=1 // pred_fallthru
      _
    // Predicated region
    $region6: #{tpu_custom_call.1} parent=1 // pred_check
      _
    $region7: #{tpu_custom_call.1} parent=1 // pred_check_branch
      %23 = sbr.rel (0) target = $region9
    $region8: #{tpu_custom_call.1} parent=1 // pred_region
      %25 = vsyncadd [#allocation6], 0
      %s27 = sshll.u32 %s1, 4
      %s28 = int_to_ptr.hbm [resolvable:$true] %s27
      %s29 = sshll.u32 [#allocation5], 4
      %s30 = int_to_ptr.vmem [resolvable:$true] %s29
      %32 = dma.hbm_to_vmem [thread:$0]  %s28, 256, %s30, [#allocation6]
    $region9: #{tpu_custom_call.1} parent=1 // pred_fallthru
      _
    // Predicated region
    $region10: #{tpu_custom_call.1} parent=1 // pred_check
      _
    $region11: #{tpu_custom_call.1} parent=1 // pred_check_branch
      %34 = sbr.rel (0) target = $region13
    $region12: #{tpu_custom_call.1} parent=1 // pred_region
      %36 = vsyncadd [#allocation6], 0
      %s38 = sshll.u32 %s2, 4
      %s39 = int_to_ptr.hbm [resolvable:$true] %s38
      %s40 = sshll.u32 [#allocation7], 4
      %s41 = int_to_ptr.vmem [resolvable:$true] %s40
      %43 = dma.hbm_to_vmem [thread:$0]  %s39, 64, %s41, [#allocation6]
    $region13: #{tpu_custom_call.1} parent=1 // pred_fallthru
      _
    // Predicated region
    $region14: #{tpu_custom_call.1} parent=1 // pred_check
      _
    $region15: #{tpu_custom_call.1} parent=1 // pred_check_branch
      %45 = sbr.rel (0) target = $region17
    $region16: #{tpu_custom_call.1} parent=1 // pred_region
      %47 = dma.done [#allocation3], 32
    $region17: #{tpu_custom_call.1} parent=1 // pred_fallthru
      _
    // Predicated region
    $region18: #{tpu_custom_call.1} parent=1 // pred_check
      _
    $region19: #{tpu_custom_call.1} parent=1 // pred_check_branch
      %49 = sbr.rel (0) target = $region21
    $region20: #{tpu_custom_call.1} parent=1 // pred_region
      %51 = dma.done [#allocation6], 256
    $region21: #{tpu_custom_call.1} parent=1 // pred_fallthru
      _
    // Predicated region
    $region22: #{tpu_custom_call.1} parent=1 // pred_check
      _
    $region23: #{tpu_custom_call.1} parent=1 // pred_check_branch
      %53 = sbr.rel (0) target = $region25
    $region24: #{tpu_custom_call.1} parent=1 // pred_region
      %55 = dma.done [#allocation6], 64
    $region25: #{tpu_custom_call.1} parent=1 // pred_fallthru
      _
    %v56 = vld [vmem:[#allocation2] sm:$0x3]
    %v57 = vld [vmem:[#allocation5] sm:$0xff]
    %v58 = vld [vmem:[#allocation5 + $0x8] sm:$0xff]
    %vm59 = vcmask 64512
    %v61 = vsel %vm59, %v56, 0
    %63 = vmatpush.msra.mxu0 0.0
    %64 = vmatpush.msra.mxu0 0.0
    %65 = vmatpush.msra.mxu0 0.0
    %66 = vmatpush.msra.mxu0 0.0
    %67 = vmatpush.msra.mxu0 0.0
    %68 = vmatpush.msra.mxu0 0.0
    %69 = vmatpush.msra.mxu0 0.0
    %70 = vmatpush.msra.mxu0 0.0
    %71 = vmatpush.msra.mxu0 0.0
    %72 = vmatpush.msra.mxu0 0.0
    %73 = vmatpush.msra.mxu0 0.0
    %74 = vmatpush.msra.mxu0 0.0
    %75 = vmatpush.msra.mxu0 0.0
    %76 = vmatpush.msra.mxu0 0.0
    %77 = vmatpush.msra.mxu0 0.0
    %78 = vmatpush.msra.mxu0 %v57
    %79 = vmatmul.f32.gmra.mxu0 %v61
    %v80 = vpop.f32.mrf.mxu0
    %v81 = vadd.f32 0.0, %v80
    %82 = vdwg.mxu0
    %83 = vmatpush.msra.mxu0 0.0
    %84 = vmatpush.msra.mxu0 0.0
    %85 = vmatpush.msra.mxu0 0.0
    %86 = vmatpush.msra.mxu0 0.0
    %87 = vmatpush.msra.mxu0 0.0
    %88 = vmatpush.msra.mxu0 0.0
    %89 = vmatpush.msra.mxu0 0.0
    %90 = vmatpush.msra.mxu0 0.0
    %91 = vmatpush.msra.mxu0 0.0
    %92 = vmatpush.msra.mxu0 0.0
    %93 = vmatpush.msra.mxu0 0.0
    %94 = vmatpush.msra.mxu0 0.0
    %95 = vmatpush.msra.mxu0 0.0
    %96 = vmatpush.msra.mxu0 0.0
    %97 = vmatpush.msra.mxu0 0.0
    %98 = vmatpush.msra.mxu0 %v58
    %99 = vmatmul.f32.gmra.mxu0 %v61
    %v100 = vpop.f32.mrf.mxu0
    %v101 = vadd.f32 0.0, %v100
    %102 = vdwg.mxu0
    %v103 = vld [vmem:[#allocation7] sm:$0xf]
    %v106 = vrot.slane %v101, 6
    %vm107 = vcmask 1041408
    %v108 = vsel %vm107, %v81, %v106
    %v110 = vmul.f32 %v103, %v108
    %111 = vst [vmem:[#allocation8] sm:$0xf] %v110
    // Predicated region
    $region26: #{tpu_custom_call.1} parent=1 // pred_check
      _
    $region27: #{tpu_custom_call.1} parent=1 // pred_check_branch
      %113 = sbr.rel (0) target = $region29
    $region28: #{tpu_custom_call.1} parent=1 // pred_region
      %115 = vsyncadd [#allocation4], 0
      %s117 = sshll.u32 [#allocation8], 4
      %s118 = int_to_ptr.vmem [resolvable:$true] %s117
      %s119 = sshll.u32 %s3, 4
      %s120 = int_to_ptr.hbm [resolvable:$true] %s119
      %122 = dma.vmem_to_hbm [thread:$0]  %s118, 64, %s120, [#allocation4]
    $region29: #{tpu_custom_call.1} parent=1 // pred_fallthru
      _
    // Predicated region
    $region30: #{tpu_custom_call.1} parent=1 // pred_check
      _
    $region31: #{tpu_custom_call.1} parent=1 // pred_check_branch
      %124 = sbr.rel (0) target = $region33
    $region32: #{tpu_custom_call.1} parent=1 // pred_region
      %126 = dma.done [#allocation4], 64
    $region33: #{tpu_custom_call.1} parent=1 // pred_fallthru
      _
    %127 = vsyncpa [#allocation3], 1
    %128 = vsyncpa [#allocation6], 1
    %129 = vsyncpa [#allocation4], 1

</llo_original>
